<compile_context>
chip_gen: v6e
topology: v6e:2x2x1
jax: 0.10.0
libtpu: 0.0.40
codegen_flags: <defaults>
</compile_context>

<pallas_src>
import jax
import jax.numpy as jnp
from jax import lax
from jax.experimental import pallas as pl
from jax.experimental.pallas import tpu as pltpu


# ----------------------------- init helpers ---------------------------------
def _orthogonal(key, shape, dtype=jnp.float32):
    """Deterministic orthogonal init matching torch.nn.init.orthogonal_
    semantics (QR of a Gaussian, sign-corrected by diag(R))."""
    rows, cols = shape[0], int(jnp.prod(jnp.array(shape[1:])))
    transpose = rows < cols
    a = jax.random.normal(key, (max(rows, cols), min(rows, cols)), dtype)
    q, r = jnp.linalg.qr(a)
    q = q * jnp.sign(jnp.diag(r))[None, :]
    if transpose:
        q = q.T
    return q[:rows, :cols].reshape(shape).astype(dtype)


def _round_up(x, m):
    return ((x + m - 1) // m) * m


def _vmem_budget_bytes():
    """Generation-aware VMEM budget: physical capacity minus ~16 MiB headroom
    for compiler scratch / double-buffering (v7x has only 64 MiB per TC)."""
    try:
        cap = int(pltpu.get_tpu_info().vmem_capacity_bytes)
    except Exception:
        cap = 64 << 20  # conservative default (v7x per-TC)
    return max(cap - (16 << 20), 16 << 20)


# ----------------------------- Pallas kernels --------------------------------
def _linear_kernel_resident(x_ref, w_ref, b_ref, o_ref):
    # x_ref: (tm, K) input dtype, w_ref: (K, Np) bf16 (VMEM-resident whole W^T),
    # b_ref: (1, Np) f32, o_ref: (tm, Np).  Single step per output tile: no
    # accumulator scratch, bias folded into the matmul epilogue.
    acc = jnp.dot(x_ref[...].astype(w_ref.dtype), w_ref[...],
                  preferred_element_type=jnp.float32)
    o_ref[...] = (acc + b_ref[...]).astype(o_ref.dtype)


def _linear_kernel_tiled(x_ref, w_ref, b_ref, o_ref, acc_ref):
    # Fallback for weights too large to keep VMEM-resident.
    # x_ref: (tm, tk), w_ref: (tk, tn) bf16, b_ref: (1, tn) f32,
    # o_ref: (tm, tn), acc_ref: (tm, tn) f32 (K-resident).
    k = pl.program_id(2)
    p = jnp.dot(x_ref[...].astype(w_ref.dtype), w_ref[...],
                preferred_element_type=jnp.float32)

    @pl.when(k == 0)
    def _():
        acc_ref[...] = p + b_ref[...]      # bias folded in, no zero-init pass

    @pl.when(k != 0)
    def _():
        acc_ref[...] += p

    @pl.when(k == pl.num_programs(2) - 1)
    def _():
        o_ref[...] = acc_ref[...].astype(o_ref.dtype)


# ----------------------------- host-side wrapper -----------------------------
def prepare_linear_params(weight, bias, *, compute_dtype=jnp.bfloat16,
                          tile_n=512, tile_k=512,
                          weight_resident_limit=16 << 20):
    """One-time parameter prep: transpose, cast to compute dtype, pad N (and K
    only in the tiled fallback) so the kernel hot path is lane-dense.
    weight: [d_out, d_in], bias: [d_out] or None."""
    d_out, d_in = weight.shape
    Np = _round_up(d_out, 128)                      # lane-dense output columns
    w_bytes = d_in * Np * jnp.dtype(compute_dtype).itemsize
    resident = w_bytes <= weight_resident_limit

    if resident:
        # Whole W^T stays in VMEM: full K, pad only N to a lane multiple.
        w_t = jnp.pad(weight.T.astype(compute_dtype),
                      ((0, 0), (0, Np - d_out)))
        tk, tn = d_in, Np
    else:
        tn = min(tile_n, Np)                        # 256/512-multiples
        tk = min(tile_k, _round_up(d_in, 128))
        Np = _round_up(Np, tn)
        Kp = _round_up(d_in, tk)
        w_t = jnp.pad(weight.T.astype(compute_dtype),
                      ((0, Kp - d_in), (0, Np - d_out)))

    if bias is None:
        b2d = jnp.zeros((1, Np), jnp.float32)
    else:
        b2d = jnp.pad(bias.astype(jnp.float32).reshape(1, d_out),
                      ((0, 0), (0, Np - d_out)))

    return dict(w_t=w_t, b2d=b2d, d_in=d_in, d_out=d_out,
                resident=resident, tk=tk, tn=tn, compute_dtype=compute_dtype)


def _pick_tm(M, tile_m):
    """Large tiles (256-multiples) and >=2 parallel M blocks when M is big
    enough (keeps both v7x TensorCores busy)."""
    if M >= 2 * 256:
        return min(tile_m, _round_up(pl.cdiv(M, 2), 256))
    return _round_up(max(M, 1), 8)


def pallas_linear(x, params, *, tile_m=512, out_dtype=None):
    """x: [..., d_in] -> [..., d_out] using the prepared params.
    out_dtype=None echoes x.dtype; pass jnp.bfloat16 to halve writeback if the
    consumer accepts bf16."""
    d_in, d_out = params["d_in"], params["d_out"]
    w_t, b2d = params["w_t"], params["b2d"]
    cdt = params["compute_dtype"]
    Kp, Np = w_t.shape

    orig_shape = x.shape
    if out_dtype is None:
        out_dtype = x.dtype
    x2d = x.reshape(-1, d_in)
    M = x2d.shape[0]

    xbytes = jnp.dtype(x2d.dtype).itemsize
    wbytes = jnp.dtype(cdt).itemsize
    obytes = jnp.dtype(out_dtype).itemsize
    budget = _vmem_budget_bytes()

    if params["resident"]:
        # -------- fast path: whole W^T + bias resident, grid over M only -----
        tm = _pick_tm(M, tile_m)

        def need(tm_):
            return (2 * tm_ * Kp * xbytes          # x tiles (double-buffered)
                    + 2 * tm_ * Np * obytes        # out tiles
                    + Kp * Np * wbytes + Np * 4)   # resident W^T + bias

        while tm > 8 and need(tm) > budget:
            tm = max(8, _round_up(tm // 2, 8))

        grid = (pl.cdiv(M, tm),)
        vmem_limit = int(min(max(2 * need(tm), 8 << 20), budget))
        cost = pl.CostEstimate(
            flops=2 * M * Kp * Np,
            transcendentals=0,
            bytes_accessed=(M * Kp * xbytes + Kp * Np * wbytes
                            + Np * 4 + M * Np * obytes),
        )

        out = pl.pallas_call(
            _linear_kernel_resident,
            out_shape=jax.ShapeDtypeStruct((M, Np), out_dtype),
            grid_spec=pltpu.PrefetchScalarGridSpec(
                num_scalar_prefetch=0,
                grid=grid,
                in_specs=[
                    pl.BlockSpec((tm, Kp), lambda i: (i, 0)),   # x rows, full K
                    pl.BlockSpec((Kp, Np), lambda i: (0, 0)),   # whole W^T
                    pl.BlockSpec((1, Np), lambda i: (0, 0)),    # bias
                ],
                out_specs=pl.BlockSpec((tm, Np), lambda i: (i, 0)),
            ),
            compiler_params=pltpu.CompilerParams(
                dimension_semantics=("parallel",),
                vmem_limit_bytes=vmem_limit,
            ),
            cost_estimate=cost,
        )(x2d, w_t, b2d)
    else:
        # -------- fallback: tiled M/N/K with f32 accumulator ------------------
        tk, tn = params["tk"], params["tn"]
        tm = _pick_tm(M, tile_m)

        # K padding is required here (garbage along K would corrupt valid
        # outputs); M is handled with partial edge blocks (garbage rows are
        # never part of the kept output rows).
        if Kp != d_in:
            x2d = jnp.pad(x2d, ((0, 0), (0, Kp - d_in)))

        def need(tm_):
            return (2 * (tm_ * tk * xbytes + tk * tn * wbytes
                         + tn * 4 + tm_ * tn * obytes)
                    + tm_ * tn * 4)                # f32 accumulator

        while tm > 8 and need(tm) > budget:
            tm = max(8, _round_up(tm // 2, 8))

        grid = (pl.cdiv(M, tm), Np // tn, Kp // tk)
        gm, gn, _ = grid
        vmem_limit = int(min(max(2 * need(tm), 8 << 20), budget))
        cost = pl.CostEstimate(
            flops=2 * M * Kp * Np,
            transcendentals=0,
            bytes_accessed=(M * Kp * xbytes * gn           # x re-read per N tile
                            + Kp * Np * wbytes * gm        # W re-read per M tile
                            + Np * 4 * gm + M * Np * obytes),
        )

        out = pl.pallas_call(
            _linear_kernel_tiled,
            out_shape=jax.ShapeDtypeStruct((M, Np), out_dtype),
            grid_spec=pltpu.PrefetchScalarGridSpec(
                num_scalar_prefetch=0,
                grid=grid,
                in_specs=[
                    pl.BlockSpec((tm, tk), lambda i, j, k: (i, k)),
                    pl.BlockSpec((tk, tn), lambda i, j, k: (k, j)),
                    pl.BlockSpec((1, tn), lambda i, j, k: (0, j)),
                ],
                out_specs=pl.BlockSpec((tm, tn), lambda i, j, k: (i, j)),
                scratch_shapes=[pltpu.VMEM((tm, tn), jnp.float32)],
            ),
            compiler_params=pltpu.CompilerParams(
                dimension_semantics=("parallel", "parallel", "arbitrary"),
                vmem_limit_bytes=vmem_limit,
            ),
            cost_estimate=cost,
        )(x2d, w_t, b2d)

    if Np != d_out:
        out = out[:, :d_out]
    return out.reshape(*orig_shape[:-1], d_out)


# ----------------------------- demo / self-test -------------------------------
if __name__ == "__main__":
    # Small shapes consistent with the module: batch=2, seq=8, d_in=32, d_out=64
    batch, seq, d_in, d_out = 2, 8, 32, 64

    key = jax.random.PRNGKey(0)
    kx, kw, kb = jax.random.split(key, 3)

    x = jax.random.normal(kx, (batch, seq, d_in), jnp.float32)

    # Parameter init mirroring the PyTorch module's __init__:
    #   nn.init.orthogonal(weight)  -> orthogonal [d_out, d_in]
    #   reset_bias_with_orthogonal  -> orthogonal [d_out, 1] flattened to [d_out]
    weight = _orthogonal(kw, (d_out, d_in))
    bias = _orthogonal(kb, (d_out, 1)).reshape(-1)

    # One-time parameter prep (transpose + bf16 cast + lane-dense N padding).
    params = prepare_linear_params(weight, bias)

    linear_fn = jax.jit(lambda xx: pallas_linear(xx, params))
    y = linear_fn(x)
    y = jax.block_until_ready(y)
    assert y.shape == (batch, seq, d_out)
    assert y.dtype == x.dtype

    # Loose check vs. plain f32 reference (kernel computes in bf16 with f32 acc).
    y_ref_f32 = x @ weight.T + bias
    assert jnp.allclose(y, y_ref_f32, atol=2e-2, rtol=2e-2)

    # Tight check vs. a reference that mimics the kernel's bf16-input/f32-acc path.
    xb = x.astype(jnp.bfloat16).astype(jnp.float32).reshape(-1, d_in)
    wb = weight.astype(jnp.bfloat16).astype(jnp.float32)
    y_ref_bf = (lax.dot_general(xb, wb.T, (((1,), (0,)), ((), ())),
                                precision=lax.Precision.HIGHEST)
                .reshape(batch, seq, d_out) + bias)
    assert jnp.allclose(y, y_ref_bf, atol=1e-3, rtol=1e-3)

    print("KERNEL_OK")
</pallas_src>

<mosaic_0001>
module attributes {stable_mosaic.version = 11 : i64} {
  func.func @_linear_kernel_resident(%arg0: i32, %arg1: memref<16x32xf32, #tpu.memory_space<vmem>>, %arg2: memref<32x128xbf16, #tpu.memory_space<vmem>>, %arg3: memref<1x128xf32, #tpu.memory_space<vmem>>, %arg4: memref<16x128xf32, #tpu.memory_space<vmem>>) attributes {dimension_semantics = [#tpu.dimension_semantics<parallel>], iteration_bounds = array<i64: 1>, scalar_prefetch = 0 : i64, scratch_operands = 0 : i64, tpu.core_type = #tpu.core_type<tc>, window_params = [{transform_indices = @transform_0, window_bounds = array<i64: 16, 32>}, {pipeline_mode = #tpu.pipeline_mode<synchronous>, transform_indices = @transform_1, window_bounds = array<i64: 32, 128>}, {pipeline_mode = #tpu.pipeline_mode<synchronous>, transform_indices = @transform_2, window_bounds = array<i64: 1, 128>}, {transform_indices = @transform_3, window_bounds = array<i64: 16, 128>}]} {
    %c0 = arith.constant 0 : index
    %c0_0 = arith.constant 0 : index
    %0 = vector.load %arg1[%c0, %c0_0] : memref<16x32xf32, #tpu.memory_space<vmem>>, vector<16x32xf32>
    %1 = arith.truncf %0 : vector<16x32xf32> to vector<16x32xbf16>
    %c0_1 = arith.constant 0 : index
    %c0_2 = arith.constant 0 : index
    %2 = vector.load %arg2[%c0_1, %c0_2] : memref<32x128xbf16, #tpu.memory_space<vmem>>, vector<32x128xbf16>
    %cst = arith.constant dense<0.000000e+00> : vector<16x128xf32>
    %3 = tpu.matmul %1, %2, %cst {dimension_numbers = #tpu.dot_dimension_numbers<[1], [0], [0], [1], [0, 0, 1, 1], [], []>} : vector<16x32xbf16>, vector<32x128xbf16>, vector<16x128xf32> -> vector<16x128xf32>
    %c0_3 = arith.constant 0 : index
    %c0_4 = arith.constant 0 : index
    %4 = vector.load %arg3[%c0_3, %c0_4] : memref<1x128xf32, #tpu.memory_space<vmem>>, vector<1x128xf32>
    %5 = vector.broadcast %4 : vector<1x128xf32> to vector<16x128xf32>
    %6 = arith.addf %3, %5 : vector<16x128xf32>
    %c0_5 = arith.constant 0 : index
    %c0_6 = arith.constant 0 : index
    %7 = vector.load %arg4[%c0_5, %c0_6] : memref<16x128xf32, #tpu.memory_space<vmem>>, vector<16x128xf32>
    tpu.vector_store %arg4[%c0_5, %c0_6], %6 {strides = array<i32>} : memref<16x128xf32, #tpu.memory_space<vmem>>, vector<16x128xf32>,
    return
  }
  func.func @transform_0(%arg0: i32) -> (i32, i32) {
    %c0_i32 = arith.constant 0 : i32
    %c0_i32_0 = arith.constant 0 : i32
    return %arg0, %c0_i32 : i32, i32
  }
  func.func @transform_1(%arg0: i32) -> (i32, i32) {
    %c0_i32 = arith.constant 0 : i32
    %c0_i32_0 = arith.constant 0 : i32
    %c0_i32_1 = arith.constant 0 : i32
    return %c0_i32, %c0_i32_0 : i32, i32
  }
  func.func @transform_2(%arg0: i32) -> (i32, i32) {
    %c0_i32 = arith.constant 0 : i32
    %c0_i32_0 = arith.constant 0 : i32
    %c0_i32_1 = arith.constant 0 : i32
    return %c0_i32, %c0_i32_0 : i32, i32
  }
  func.func @transform_3(%arg0: i32) -> (i32, i32) {
    %c0_i32 = arith.constant 0 : i32
    %c0_i32_0 = arith.constant 0 : i32
    return %arg0, %c0_i32 : i32, i32
  }
}

</mosaic_0001>

<llo_original>
// kernel: _lambda_.1
$region0: #{_lambda_.1}
  #allocation0 [shape = 'u32[]', space=smem, size = 0x4, offset = 0x4, fixed_abs, tag = 'smem constant byte address 0x4 - core index']
  #allocation1 [shape = 'u32[144,128]{1,0:T(1,128)}', space=vmem, size = 0x12000, scoped, tag = 'internal scratch']
  %s0 = inlined_call_operand.hbm [shape: f32[16,32], index: 0, kind: input, shape index: {}]
  %s1 = inlined_call_operand.hbm [shape: bf16[32,128], index: 1, kind: input, shape index: {}]
  %s2 = inlined_call_operand.vmem [shape: f32[1,128], index: 2, kind: input, shape index: {}]
  %s3 = inlined_call_operand.vmem [shape: f32[16,128], index: 3, kind: output, shape index: {}]
  %s4 = sld [smem:[#allocation0]]
  $region30: #{_lambda_.1} parent=0
    _
  %s6 = ssub.s32 1, %s4
  %s7 = scalar_select 0, %s6, %s4
  $region1: #{_lambda_.1} parent=0
    #allocation2 [shape = 'u8[8192]{0}', space=vmem, size = 0x2000, scoped, tag = 'input window, operand 0, single buffered']
    #allocation3 [shape = 's32[1]{0}', space=sflag, size = 0x4, scoped, tag = 'scoped memory for _lambda_.1']
    #allocation4 [shape = 'u8[8192]{0}', space=vmem, size = 0x2000, scoped, tag = 'input window, operand 1, single buffered']
    #allocation5 [shape = 's32[1]{0}', space=sflag, size = 0x4, scoped, tag = 'scoped memory for _lambda_.1']
    %8 = vsyncpa [#allocation3], 0
    %9 = vsyncpa [#allocation5], 0
    // Predicated region
    $region2: #{_lambda_.1} parent=1 // pred_check
      _
    $region3: #{_lambda_.1} parent=1 // pred_check_branch
      %11 = sbr.rel (0) target = $region5
    $region4: #{_lambda_.1} parent=1 // pred_region
      %s13 = ssub.s32 256, 256
      %14 = vsyncadd [#allocation3], %s13
      %s15 = sshll.u32 [#allocation2], 4
      %s16 = int_to_ptr.vmem [resolvable:$true] %s15
      %21 = dma.hbm_to_vmem [thread:$0]  %s0, 256, %s16, [#allocation3], 128, 128, 8
    $region5: #{_lambda_.1} parent=1 // pred_fallthru
      _
    // Predicated region
    $region6: #{_lambda_.1} parent=1 // pred_check
      _
    $region7: #{_lambda_.1} parent=1 // pred_check_branch
      %23 = sbr.rel (0) target = $region9
    $region8: #{_lambda_.1} parent=1 // pred_region
      %s25 = ssub.s32 256, 256
      %26 = vsyncadd [#allocation5], %s25
      %s27 = sshll.u32 [#allocation4], 4
      %s28 = int_to_ptr.vmem [resolvable:$true] %s27
      %33 = dma.hbm_to_vmem [thread:$0]  %s1, 256, %s28, [#allocation5], 64, 64, 4
    $region9: #{_lambda_.1} parent=1 // pred_fallthru
      _
    // Predicated region
    $region10: #{_lambda_.1} parent=1 // pred_check
      _
    $region11: #{_lambda_.1} parent=1 // pred_check_branch
      %35 = sbr.rel (0) target = $region13
    $region12: #{_lambda_.1} parent=1 // pred_region
      _
    $region13: #{_lambda_.1} parent=1 // pred_fallthru
      _
    // Predicated region
    $region14: #{_lambda_.1} parent=1 // pred_check
      _
    $region15: #{_lambda_.1} parent=1 // pred_check_branch
      %37 = sbr.rel (0) target = $region17
    $region16: #{_lambda_.1} parent=1 // pred_region
      %38 = dma.done [#allocation3], 256
    $region17: #{_lambda_.1} parent=1 // pred_fallthru
      _
    // Predicated region
    $region18: #{_lambda_.1} parent=1 // pred_check
      _
    $region19: #{_lambda_.1} parent=1 // pred_check_branch
      %40 = sbr.rel (0) target = $region21
    $region20: #{_lambda_.1} parent=1 // pred_region
      %41 = dma.done [#allocation5], 256
    $region21: #{_lambda_.1} parent=1 // pred_fallthru
      _
    %v43 = vld [vmem:[#allocation2] sm:$0xff]
    %v44 = vld [vmem:[#allocation2 + $0x8] sm:$0xff]
    %v45 = vpack.c.bf16 %v44, %v43
    %v46 = vld [vmem:[#allocation4] sm:$0xf]
    %v47 = vld [vmem:[#allocation4 + $0x4] sm:$0xf]
    %v48 = vld [vmem:[#allocation4 + $0x8] sm:$0xf]
    %v49 = vld [vmem:[#allocation4 + $0xc] sm:$0xf]
    %v50 = vld [vmem:[%s2] sm:$0x1]
    %v52 = vlaneseq
    %v53 = vshrl.u32 %v52, 7
    %v54 = vsub.s32 0, %v53
    %v55 = vrot.slane %v50, %v54
    %v61 = vunpack.c.l.b16 %v46
    %v62 = vunpack.c.l.b16 %v47
    %v63 = vunpack.c.l.b16 %v48
    %v64 = vunpack.c.l.b16 %v49
    %v65 = vpack.c.b16 %v62, %v61
    %v66 = vpack.c.b16 %v64, %v63
    %vm69 = vcmask 261120
    %v71 = vsel %vm69, %v45, 0
    %73 = vmatprep.subr.bf16.mxu0 0
    %74 = vmatpush1.bf16.msra.mxu0 0
    %75 = vmatprep.subr.bf16.mxu0 0
    %76 = vmatpush1.bf16.msra.mxu0 0
    %77 = vmatprep.subr.bf16.mxu0 0
    %78 = vmatpush1.bf16.msra.mxu0 0
    %79 = vmatprep.subr.bf16.mxu0 0
    %80 = vmatpush1.bf16.msra.mxu0 0
    %81 = vmatprep.subr.bf16.mxu0 0
    %82 = vmatpush1.bf16.msra.mxu0 0
    %83 = vmatprep.subr.bf16.mxu0 0
    %84 = vmatpush1.bf16.msra.mxu0 0
    %85 = vmatprep.subr.bf16.mxu0 0
    %86 = vmatpush1.bf16.msra.mxu0 %v66
    %87 = vmatprep.subr.bf16.mxu0 0
    %88 = vmatpush1.bf16.msra.mxu0 %v65
    %89 = vmatprep.subr.bf16.mxu0 0
    %90 = vmatpush2.bf16.msra.mxu0 0
    %91 = vmatprep.subr.bf16.mxu0 0
    %92 = vmatpush2.bf16.msra.mxu0 0
    %93 = vmatprep.subr.bf16.mxu0 0
    %94 = vmatpush2.bf16.msra.mxu0 0
    %95 = vmatprep.subr.bf16.mxu0 0
    %96 = vmatpush2.bf16.msra.mxu0 0
    %97 = vmatprep.subr.bf16.mxu0 0
    %98 = vmatpush2.bf16.msra.mxu0 0
    %99 = vmatprep.subr.bf16.mxu0 0
    %100 = vmatpush2.bf16.msra.mxu0 0
    %101 = vmatprep.subr.bf16.mxu0 0
    %102 = vmatpush2.bf16.msra.mxu0 0
    %103 = vmatprep.subr.bf16.mxu0 0
    %104 = vmatpush2.bf16.msra.mxu0 0
    %105 = vmatprep.mubr.bf16.mxu0 0
    %106 = vmatmul.mubr.bf16.gmra.mxu0 %v71
    %v107 = vpop.f32.mrf.mxu0
    %v108 = vadd.f32 %v55, %v107
    %v109 = vpop.f32.mrf.mxu0
    %v110 = vpop.f32.mrf.mxu0
    %v111 = vadd.f32 %v55, %v110
    %v112 = vpop.f32.mrf.mxu0
    %113 = vdwg.mxu0
    %114 = vst [vmem:[%s3] sm:$0xff] %v108
    %115 = vst [vmem:[%s3 + $0x8] sm:$0xff] %v111
    // Predicated region
    $region22: #{_lambda_.1} parent=1 // pred_check
      _
    $region23: #{_lambda_.1} parent=1 // pred_check_branch
      %117 = sbr.rel (0) target = $region25
    $region24: #{_lambda_.1} parent=1 // pred_region
      _
    $region25: #{_lambda_.1} parent=1 // pred_fallthru
      _
    // Predicated region
    $region26: #{_lambda_.1} parent=1 // pred_check
      _
    $region27: #{_lambda_.1} parent=1 // pred_check_branch
      %119 = sbr.rel (0) target = $region29
    $region28: #{_lambda_.1} parent=1 // pred_region
      _
    $region29: #{_lambda_.1} parent=1 // pred_fallthru
      _
    %120 = vsyncpa [#allocation3], 1
    %121 = vsyncpa [#allocation5], 1

</llo_original>
